<compile_context>
chip_gen: v6e
topology: v6e:2x2x1
jax: 0.10.0
libtpu: 0.0.40
codegen_flags: <defaults>
</compile_context>

<pallas_src>
import jax
import jax.numpy as jnp
from jax.experimental import pallas as pl
from jax.experimental.pallas import tpu as pltpu

N_ATOMS = 51
Vmax = 10
Vmin = -10
DELTA_Z = (Vmax - Vmin) / (N_ATOMS - 1)  # parity with the torch module (unused in forward)

H1 = 512
H2 = 256


def _round_up(v, m):
    return ((v + m - 1) // m) * m


# --------------------------------------------------------------------------
# Kernel body: one batch tile through the whole 3-layer MLP.
# Weights are bf16 (VMEM-resident across grid steps via constant index_maps),
# biases f32, every matmul accumulates in f32 on the MXU.
# --------------------------------------------------------------------------
def _mlp_kernel(x_ref, w1_ref, b1_ref, w2_ref, b2_ref, w3_ref, b3_ref, out_ref):
    x = x_ref[...].astype(jnp.bfloat16)  # f32 -> bf16 cast in VMEM, no extra HBM copy
    h1 = jnp.dot(x, w1_ref[...], preferred_element_type=jnp.float32) + b1_ref[...]
    h1 = jnp.maximum(h1, 0.0).astype(jnp.bfloat16)
    h2 = jnp.dot(h1, w2_ref[...], preferred_element_type=jnp.float32) + b2_ref[...]
    h2 = jnp.maximum(h2, 0.0).astype(jnp.bfloat16)
    out = jnp.dot(h2, w3_ref[...], preferred_element_type=jnp.float32) + b3_ref[...]
    out_ref[...] = out.astype(out_ref.dtype)


# --------------------------------------------------------------------------
# One-time parameter preparation (hoisted out of the per-call forward).
# --------------------------------------------------------------------------
def prepare_params(params):
    """Convert torch-layout f32 params (W:(in,out), b:(1,out)) into kernel layout.

    - bf16 weights (halves weight DMA bytes; MXU-native on v5e/v6e/v7x)
    - obs (K) dim of W1 zero-padded to a multiple of 8 sublanes
    - final-layer columns zero-padded to a multiple of 128 lanes
    - biases stay f32
    """
    w1, b1, w2, b2, w3, b3 = params
    obs, h1 = w1.shape
    out_dim = w3.shape[1]

    obs_pad = _round_up(obs, 8)
    out_pad = _round_up(out_dim, 128)

    w1p = jnp.zeros((obs_pad, h1), jnp.bfloat16).at[:obs, :].set(w1.astype(jnp.bfloat16))
    w2p = w2.astype(jnp.bfloat16)
    w3p = jnp.zeros((w3.shape[0], out_pad), jnp.bfloat16).at[:, :out_dim].set(
        w3.astype(jnp.bfloat16))
    b1p = b1.astype(jnp.float32).reshape(1, -1)
    b2p = b2.astype(jnp.float32).reshape(1, -1)
    b3p = jnp.zeros((1, out_pad), jnp.float32).at[:, :out_dim].set(
        b3.astype(jnp.float32).reshape(1, -1))
    return (w1p, b1p, w2p, b2p, w3p, b3p)


# --------------------------------------------------------------------------
# Forward pass.  x: (B, obs) f32 -> (B, n_actions, N_ATOMS) out_dtype.
# Call through jax.jit (static n_actions) so the final slice/reshape fuses
# with downstream ops (softmax etc.) and launch overhead is amortised.
# --------------------------------------------------------------------------
def distributional_dqn_forward(x, prepped_params, n_actions, *,
                               out_dtype=jnp.float32, tm=None):
    w1p, b1p, w2p, b2p, w3p, b3p = prepped_params
    batch, obs = x.shape
    obs_pad = w1p.shape[0]
    out_pad = w3p.shape[1]
    out_dim = n_actions * N_ATOMS

    # ---- batch tiling: <=128-row tiles, minimal row padding ----------------
    b8 = max(8, _round_up(batch, 8))
    if tm is None:
        n_tiles = pl.cdiv(b8, 128)            # >=2 tiles once batch > 128 (v7x megacore)
        tm = _round_up(pl.cdiv(b8, n_tiles), 8)
    else:
        tm = _round_up(tm, 8)
        n_tiles = pl.cdiv(b8, tm)
    padded_b = n_tiles * tm

    # Single tiny pad op (rows to padded_b, cols to obs_pad); x stays f32.
    if padded_b != batch or obs_pad != obs:
        xp = jnp.zeros((padded_b, obs_pad), x.dtype).at[:batch, :obs].set(x)
    else:
        xp = x

    # Weights/biases: constant index_map -> VMEM-resident across batch tiles.
    def const(a):
        return pl.BlockSpec(a.shape, lambda i: (0,) * a.ndim)

    flops = 2 * padded_b * (obs_pad * H1 + H1 * H2 + H2 * out_pad)
    bytes_accessed = (
        xp.size * xp.dtype.itemsize
        + sum(a.size * a.dtype.itemsize for a in prepped_params)
        + padded_b * out_pad * jnp.dtype(out_dtype).itemsize
    )

    out_flat = pl.pallas_call(
        _mlp_kernel,
        out_shape=jax.ShapeDtypeStruct((padded_b, out_pad), out_dtype),
        grid=(n_tiles,),
        in_specs=[
            pl.BlockSpec((tm, obs_pad), lambda i: (i, 0)),  # x tile, pipelined over batch
            const(w1p), const(b1p),
            const(w2p), const(b2p),
            const(w3p), const(b3p),
        ],
        out_specs=pl.BlockSpec((tm, out_pad), lambda i: (i, 0)),
        compiler_params=pltpu.CompilerParams(
            dimension_semantics=("parallel",),  # shard batch tiles across TCs on v7x
            vmem_limit_bytes=8 << 20,           # actual footprint < 2 MiB; safe on v7x
        ),
        cost_estimate=pl.CostEstimate(
            flops=flops, transcendentals=0, bytes_accessed=bytes_accessed),
    )(xp, w1p, b1p, w2p, b2p, w3p, b3p)

    # Un-pad and apply the torch .view(batch, -1, N_ATOMS) semantics.
    # (Padded garbage rows/cols are sliced off here; never read beyond them.)
    return out_flat[:batch, :out_dim].reshape(batch, n_actions, N_ATOMS)


# --------------------------------------------------------------------------
# Synthetic params + plain-JAX reference (same bf16/f32-accumulate recipe).
# --------------------------------------------------------------------------
def make_params(key, obs_size, n_actions):
    """Deterministic synthetic parameters (shapes match the torch module, f32)."""
    ks = jax.random.split(key, 6)
    dims = [(obs_size, H1), (H1, H2), (H2, N_ATOMS * n_actions)]
    params = []
    for i, (din, dout) in enumerate(dims):
        bound = 1.0 / jnp.sqrt(din)
        w = jax.random.uniform(ks[2 * i], (din, dout), jnp.float32, -bound, bound)
        b = jax.random.uniform(ks[2 * i + 1], (1, dout), jnp.float32, -bound, bound)
        params += [w, b]
    return tuple(params)


def reference_forward(x, params, n_actions):
    w1, b1, w2, b2, w3, b3 = params
    xb = x.astype(jnp.bfloat16)
    h1 = jnp.maximum(
        jnp.dot(xb, w1.astype(jnp.bfloat16), preferred_element_type=jnp.float32) + b1, 0.0)
    h2 = jnp.maximum(
        jnp.dot(h1.astype(jnp.bfloat16), w2.astype(jnp.bfloat16),
                preferred_element_type=jnp.float32) + b2, 0.0)
    out = jnp.dot(h2.astype(jnp.bfloat16), w3.astype(jnp.bfloat16),
                  preferred_element_type=jnp.float32) + b3
    return out.reshape(x.shape[0], n_actions, N_ATOMS)


if __name__ == "__main__":
    obs_size = 6    # Acrobot observation size
    n_actions = 3   # Acrobot action count

    key = jax.random.PRNGKey(0)
    kx, kp, kx2 = jax.random.split(key, 3)
    params = make_params(kp, obs_size, n_actions)
    prepped = prepare_params(params)          # one-time prep, reused every step

    fwd = jax.jit(distributional_dqn_forward, static_argnums=(2,))

    # Small DQN-sized batch (single tile).
    batch = 2
    x = jax.random.normal(kx, (batch, obs_size), jnp.float32)
    out = jax.block_until_ready(fwd(x, prepped, n_actions))
    ref = reference_forward(x, params, n_actions)
    assert out.shape == (batch, n_actions, N_ATOMS), f"bad shape {out.shape}"
    assert jnp.allclose(out, ref, atol=1e-2, rtol=1e-2), "mismatch vs reference (batch=2)"

    # Multi-tile path (exercises grid > 1 and row padding).
    batch2 = 260
    x2 = jax.random.normal(kx2, (batch2, obs_size), jnp.float32)
    out2 = jax.block_until_ready(fwd(x2, prepped, n_actions))
    ref2 = reference_forward(x2, params, n_actions)
    assert out2.shape == (batch2, n_actions, N_ATOMS), f"bad shape {out2.shape}"
    assert jnp.allclose(out2, ref2, atol=1e-2, rtol=1e-2), "mismatch vs reference (batch=260)"

    print("KERNEL_OK")
</pallas_src>

<mosaic_0001>
module attributes {stable_mosaic.version = 11 : i64} {
  func.func @_mlp_kernel(%arg0: i32, %arg1: memref<8x8xf32, #tpu.memory_space<vmem>>, %arg2: memref<8x512xbf16, #tpu.memory_space<vmem>>, %arg3: memref<1x512xf32, #tpu.memory_space<vmem>>, %arg4: memref<512x256xbf16, #tpu.memory_space<vmem>>, %arg5: memref<1x256xf32, #tpu.memory_space<vmem>>, %arg6: memref<256x256xbf16, #tpu.memory_space<vmem>>, %arg7: memref<1x256xf32, #tpu.memory_space<vmem>>, %arg8: memref<8x256xf32, #tpu.memory_space<vmem>>) attributes {dimension_semantics = [#tpu.dimension_semantics<parallel>], iteration_bounds = array<i64: 1>, scalar_prefetch = 0 : i64, scratch_operands = 0 : i64, tpu.core_type = #tpu.core_type<tc>, window_params = [{transform_indices = @transform_0, window_bounds = array<i64: 8, 8>}, {pipeline_mode = #tpu.pipeline_mode<synchronous>, transform_indices = @transform_1, window_bounds = array<i64: 8, 512>}, {pipeline_mode = #tpu.pipeline_mode<synchronous>, transform_indices = @transform_2, window_bounds = array<i64: 1, 512>}, {pipeline_mode = #tpu.pipeline_mode<synchronous>, transform_indices = @transform_3, window_bounds = array<i64: 512, 256>}, {pipeline_mode = #tpu.pipeline_mode<synchronous>, transform_indices = @transform_4, window_bounds = array<i64: 1, 256>}, {pipeline_mode = #tpu.pipeline_mode<synchronous>, transform_indices = @transform_5, window_bounds = array<i64: 256, 256>}, {pipeline_mode = #tpu.pipeline_mode<synchronous>, transform_indices = @transform_6, window_bounds = array<i64: 1, 256>}, {transform_indices = @transform_7, window_bounds = array<i64: 8, 256>}]} {
    %c0 = arith.constant 0 : index
    %c0_0 = arith.constant 0 : index
    %0 = vector.load %arg1[%c0, %c0_0] : memref<8x8xf32, #tpu.memory_space<vmem>>, vector<8x8xf32>
    %1 = arith.truncf %0 : vector<8x8xf32> to vector<8x8xbf16>
    %c0_1 = arith.constant 0 : index
    %c0_2 = arith.constant 0 : index
    %2 = vector.load %arg2[%c0_1, %c0_2] : memref<8x512xbf16, #tpu.memory_space<vmem>>, vector<8x512xbf16>
    %cst = arith.constant dense<0.000000e+00> : vector<8x512xf32>
    %3 = tpu.matmul %1, %2, %cst {dimension_numbers = #tpu.dot_dimension_numbers<[1], [0], [0], [1], [0, 0, 1, 1], [], []>} : vector<8x8xbf16>, vector<8x512xbf16>, vector<8x512xf32> -> vector<8x512xf32>
    %c0_3 = arith.constant 0 : index
    %c0_4 = arith.constant 0 : index
    %4 = vector.load %arg3[%c0_3, %c0_4] : memref<1x512xf32, #tpu.memory_space<vmem>>, vector<1x512xf32>
    %5 = vector.broadcast %4 : vector<1x512xf32> to vector<8x512xf32>
    %6 = arith.addf %3, %5 : vector<8x512xf32>
    %cst_5 = arith.constant 0.000000e+00 : f32
    %7 = vector.broadcast %cst_5 : f32 to vector<8x512xf32>
    %8 = arith.maximumf %6, %7 : vector<8x512xf32>
    %9 = arith.truncf %8 : vector<8x512xf32> to vector<8x512xbf16>
    %c0_6 = arith.constant 0 : index
    %c0_7 = arith.constant 0 : index
    %10 = vector.load %arg4[%c0_6, %c0_7] : memref<512x256xbf16, #tpu.memory_space<vmem>>, vector<512x256xbf16>
    %cst_8 = arith.constant dense<0.000000e+00> : vector<8x256xf32>
    %11 = tpu.matmul %9, %10, %cst_8 {dimension_numbers = #tpu.dot_dimension_numbers<[1], [0], [0], [1], [0, 0, 1, 1], [], []>} : vector<8x512xbf16>, vector<512x256xbf16>, vector<8x256xf32> -> vector<8x256xf32>
    %c0_9 = arith.constant 0 : index
    %c0_10 = arith.constant 0 : index
    %12 = vector.load %arg5[%c0_9, %c0_10] : memref<1x256xf32, #tpu.memory_space<vmem>>, vector<1x256xf32>
    %13 = vector.broadcast %12 : vector<1x256xf32> to vector<8x256xf32>
    %14 = arith.addf %11, %13 : vector<8x256xf32>
    %cst_11 = arith.constant 0.000000e+00 : f32
    %15 = vector.broadcast %cst_11 : f32 to vector<8x256xf32>
    %16 = arith.maximumf %14, %15 : vector<8x256xf32>
    %17 = arith.truncf %16 : vector<8x256xf32> to vector<8x256xbf16>
    %c0_12 = arith.constant 0 : index
    %c0_13 = arith.constant 0 : index
    %18 = vector.load %arg6[%c0_12, %c0_13] : memref<256x256xbf16, #tpu.memory_space<vmem>>, vector<256x256xbf16>
    %cst_14 = arith.constant dense<0.000000e+00> : vector<8x256xf32>
    %19 = tpu.matmul %17, %18, %cst_14 {dimension_numbers = #tpu.dot_dimension_numbers<[1], [0], [0], [1], [0, 0, 1, 1], [], []>} : vector<8x256xbf16>, vector<256x256xbf16>, vector<8x256xf32> -> vector<8x256xf32>
    %c0_15 = arith.constant 0 : index
    %c0_16 = arith.constant 0 : index
    %20 = vector.load %arg7[%c0_15, %c0_16] : memref<1x256xf32, #tpu.memory_space<vmem>>, vector<1x256xf32>
    %21 = vector.broadcast %20 : vector<1x256xf32> to vector<8x256xf32>
    %22 = arith.addf %19, %21 : vector<8x256xf32>
    %c0_17 = arith.constant 0 : index
    %c0_18 = arith.constant 0 : index
    %23 = vector.load %arg8[%c0_17, %c0_18] : memref<8x256xf32, #tpu.memory_space<vmem>>, vector<8x256xf32>
    tpu.vector_store %arg8[%c0_17, %c0_18], %22 {strides = array<i32>} : memref<8x256xf32, #tpu.memory_space<vmem>>, vector<8x256xf32>,
    return
  }
  func.func @transform_0(%arg0: i32) -> (i32, i32) {
    %c0_i32 = arith.constant 0 : i32
    %c0_i32_0 = arith.constant 0 : i32
    return %arg0, %c0_i32 : i32, i32
  }
  func.func @transform_1(%arg0: i32) -> (i32, i32) {
    %c0_i32 = arith.constant 0 : i32
    %c0_i32_0 = arith.constant 0 : i32
    %c0_i32_1 = arith.constant 0 : i32
    return %c0_i32, %c0_i32_0 : i32, i32
  }
  func.func @transform_2(%arg0: i32) -> (i32, i32) {
    %c0_i32 = arith.constant 0 : i32
    %c0_i32_0 = arith.constant 0 : i32
    %c0_i32_1 = arith.constant 0 : i32
    return %c0_i32, %c0_i32_0 : i32, i32
  }
  func.func @transform_3(%arg0: i32) -> (i32, i32) {
    %c0_i32 = arith.constant 0 : i32
    %c0_i32_0 = arith.constant 0 : i32
    %c0_i32_1 = arith.constant 0 : i32
    return %c0_i32, %c0_i32_0 : i32, i32
  }
  func.func @transform_4(%arg0: i32) -> (i32, i32) {
    %c0_i32 = arith.constant 0 : i32
    %c0_i32_0 = arith.constant 0 : i32
    %c0_i32_1 = arith.constant 0 : i32
    return %c0_i32, %c0_i32_0 : i32, i32
  }
  func.func @transform_5(%arg0: i32) -> (i32, i32) {
    %c0_i32 = arith.constant 0 : i32
    %c0_i32_0 = arith.constant 0 : i32
    %c0_i32_1 = arith.constant 0 : i32
    return %c0_i32, %c0_i32_0 : i32, i32
  }
  func.func @transform_6(%arg0: i32) -> (i32, i32) {
    %c0_i32 = arith.constant 0 : i32
    %c0_i32_0 = arith.constant 0 : i32
    %c0_i32_1 = arith.constant 0 : i32
    return %c0_i32, %c0_i32_0 : i32, i32
  }
  func.func @transform_7(%arg0: i32) -> (i32, i32) {
    %c0_i32 = arith.constant 0 : i32
    %c0_i32_0 = arith.constant 0 : i32
    return %arg0, %c0_i32 : i32, i32
  }
}

</mosaic_0001>

<llo_original>
// kernel: distributional_dqn_forward.1
$region0: #{distributional_dqn_forward.1}
  #allocation0 [shape = 'u32[]', space=smem, size = 0x4, offset = 0x4, fixed_abs, tag = 'smem constant byte address 0x4 - core index']
  #allocation1 [shape = 'u32[144,128]{1,0:T(1,128)}', space=vmem, size = 0x12000, scoped, tag = 'internal scratch']
  %s0 = inlined_call_operand.vmem [shape: f32[8,8], index: 0, kind: input, shape index: {}]
  %s1 = inlined_call_operand.hbm [shape: bf16[8,512], index: 1, kind: input, shape index: {}]
  %s2 = inlined_call_operand.vmem [shape: f32[1,512], index: 2, kind: input, shape index: {}]
  %s3 = inlined_call_operand.hbm [shape: bf16[512,256], index: 3, kind: input, shape index: {}]
  %s4 = inlined_call_operand.vmem [shape: f32[1,256], index: 4, kind: input, shape index: {}]
  %s5 = inlined_call_operand.hbm [shape: bf16[256,256], index: 5, kind: input, shape index: {}]
  %s6 = inlined_call_operand.vmem [shape: f32[1,256], index: 6, kind: input, shape index: {}]
  %s7 = inlined_call_operand.vmem [shape: f32[8,256], index: 7, kind: output, shape index: {}]
  %s8 = sld [smem:[#allocation0]]
  $region50: #{distributional_dqn_forward.1} parent=0
    _
  %s10 = ssub.s32 1, %s8
  %s11 = scalar_select 0, %s10, %s8
  $region1: #{distributional_dqn_forward.1} parent=0
    #allocation2 [shape = 'u8[8192]{0}', space=vmem, size = 0x2000, scoped, tag = 'input window, operand 1, single buffered']
    #allocation3 [shape = 's32[1]{0}', space=sflag, size = 0x4, scoped, tag = 'scoped memory for distributional_dqn_forward.1']
    #allocation4 [shape = 'u8[262144]{0}', space=vmem, size = 0x40000, scoped, tag = 'input window, operand 3, single buffered']
    #allocation5 [shape = 's32[1]{0}', space=sflag, size = 0x4, scoped, tag = 'scoped memory for distributional_dqn_forward.1']
    #allocation6 [shape = 'u8[131072]{0}', space=vmem, size = 0x20000, scoped, tag = 'input window, operand 5, single buffered']
    %12 = vsyncpa [#allocation3], 0
    %13 = vsyncpa [#allocation5], 0
    // Predicated region
    $region2: #{distributional_dqn_forward.1} parent=1 // pred_check
      _
    $region3: #{distributional_dqn_forward.1} parent=1 // pred_check_branch
      %15 = sbr.rel (0) target = $region5
    $region4: #{distributional_dqn_forward.1} parent=1 // pred_region
      _
    $region5: #{distributional_dqn_forward.1} parent=1 // pred_fallthru
      _
    // Predicated region
    $region6: #{distributional_dqn_forward.1} parent=1 // pred_check
      _
    $region7: #{distributional_dqn_forward.1} parent=1 // pred_check_branch
      %17 = sbr.rel (0) target = $region9
    $region8: #{distributional_dqn_forward.1} parent=1 // pred_region
      %s19 = ssub.s32 256, 256
      %20 = vsyncadd [#allocation3], %s19
      %s22 = sshll.u32 [#allocation2], 4
      %s23 = int_to_ptr.vmem [resolvable:$true] %s22
      %25 = dma.hbm_to_vmem [thread:$0]  %s1, 256, %s23, [#allocation3]
    $region9: #{distributional_dqn_forward.1} parent=1 // pred_fallthru
      _
    // Predicated region
    $region10: #{distributional_dqn_forward.1} parent=1 // pred_check
      _
    $region11: #{distributional_dqn_forward.1} parent=1 // pred_check_branch
      %27 = sbr.rel (0) target = $region13
    $region12: #{distributional_dqn_forward.1} parent=1 // pred_region
      _
    $region13: #{distributional_dqn_forward.1} parent=1 // pred_fallthru
      _
    // Predicated region
    $region14: #{distributional_dqn_forward.1} parent=1 // pred_check
      _
    $region15: #{distributional_dqn_forward.1} parent=1 // pred_check_branch
      %29 = sbr.rel (0) target = $region17
    $region16: #{distributional_dqn_forward.1} parent=1 // pred_region
      %s31 = ssub.s32 8192, 8192
      %32 = vsyncadd [#allocation5], %s31
      %s33 = sshll.u32 [#allocation4], 4
      %s34 = int_to_ptr.vmem [resolvable:$true] %s33
      %39 = dma.hbm_to_vmem [thread:$0]  %s3, 8192, %s34, [#allocation5], 128, 128, 8
    $region17: #{distributional_dqn_forward.1} parent=1 // pred_fallthru
      _
    // Predicated region
    $region18: #{distributional_dqn_forward.1} parent=1 // pred_check
      _
    $region19: #{distributional_dqn_forward.1} parent=1 // pred_check_branch
      %41 = sbr.rel (0) target = $region21
    $region20: #{distributional_dqn_forward.1} parent=1 // pred_region
      _
    $region21: #{distributional_dqn_forward.1} parent=1 // pred_fallthru
      _
    // Predicated region
    $region22: #{distributional_dqn_forward.1} parent=1 // pred_check
      _
    $region23: #{distributional_dqn_forward.1} parent=1 // pred_check_branch
      %43 = sbr.rel (0) target = $region25
    $region24: #{distributional_dqn_forward.1} parent=1 // pred_region
      %s45 = ssub.s32 4096, 4096
      %46 = vsyncadd [#allocation5], %s45
      %s47 = sshll.u32 [#allocation6], 4
      %s48 = int_to_ptr.vmem [resolvable:$true] %s47
      %53 = dma.hbm_to_vmem [thread:$0]  %s5, 4096, %s48, [#allocation5], 128, 128, 8
    $region25: #{distributional_dqn_forward.1} parent=1 // pred_fallthru
      _
    // Predicated region
    $region26: #{distributional_dqn_forward.1} parent=1 // pred_check
      _
    $region27: #{distributional_dqn_forward.1} parent=1 // pred_check_branch
      %55 = sbr.rel (0) target = $region29
    $region28: #{distributional_dqn_forward.1} parent=1 // pred_region
      _
    $region29: #{distributional_dqn_forward.1} parent=1 // pred_fallthru
      _
    // Predicated region
    $region30: #{distributional_dqn_forward.1} parent=1 // pred_check
      _
    $region31: #{distributional_dqn_forward.1} parent=1 // pred_check_branch
      %57 = sbr.rel (0) target = $region33
    $region32: #{distributional_dqn_forward.1} parent=1 // pred_region
      %58 = dma.done [#allocation3], 256
    $region33: #{distributional_dqn_forward.1} parent=1 // pred_fallthru
      _
    // Predicated region
    $region34: #{distributional_dqn_forward.1} parent=1 // pred_check
      _
    $region35: #{distributional_dqn_forward.1} parent=1 // pred_check_branch
      %60 = sbr.rel (0) target = $region37
    $region36: #{distributional_dqn_forward.1} parent=1 // pred_region
      %61 = dma.done [#allocation5], 8192
    $region37: #{distributional_dqn_forward.1} parent=1 // pred_fallthru
      _
    // Predicated region
    $region38: #{distributional_dqn_forward.1} parent=1 // pred_check
      _
    $region39: #{distributional_dqn_forward.1} parent=1 // pred_check_branch
      %63 = sbr.rel (0) target = $region41
    $region40: #{distributional_dqn_forward.1} parent=1 // pred_region
      %64 = dma.done [#allocation5], 4096
    $region41: #{distributional_dqn_forward.1} parent=1 // pred_fallthru
      _
    %v66 = vld [vmem:[%s0] sm:$0xff]
    %v67 = vpack.c.bf16 %v66, %v66
    %v68 = vld [vmem:[#allocation2] sm:$0xff]
    %v69 = vld [vmem:[#allocation2 + $0x8] sm:$0xff]
    %v70 = vld [vmem:[%s2] sm:$0xf]
    %v72 = vlaneseq
    %v73 = vshrl.u32 %v72, 7
    %v74 = vsub.s32 0, %v73
    %v75 = vrot.slane %v70, %v74
    %v76 = vlaneseq
    %v77 = vshrl.u32 %v76, 7
    %v78 = vsub.s32 1, %v77
    %v79 = vrot.slane %v70, %v78
    %v80 = vlaneseq
    %v81 = vshrl.u32 %v80, 7
    %v82 = vsub.s32 2, %v81
    %v83 = vrot.slane %v70, %v82
    %v84 = vlaneseq
    %v85 = vshrl.u32 %v84, 7
    %v86 = vsub.s32 3, %v85
    %v87 = vrot.slane %v70, %v86
    %v94 = vunpack.c.l.b16 %v68
    %v95 = vunpack.c.h.b16 %v68
    %v96 = vunpack.c.l.b16 %v69
    %v97 = vunpack.c.h.b16 %v69
    %v98 = vpack.c.b16 %v94, %v94
    %v99 = vpack.c.b16 %v95, %v95
    %v100 = vpack.c.b16 %v96, %v96
    %v101 = vpack.c.b16 %v97, %v97
    %vm102 = vcmask 64512
    %v104 = vsel %vm102, %v67, 0
    %vm106 = vcmask 1043456
    %v108 = vsel %vm106, %v98, 0
    %v111 = vsel %vm106, %v99, 0
    %v114 = vsel %vm106, %v100, 0
    %v117 = vsel %vm106, %v101, 0
    %119 = vmatprep.subr.bf16.mxu0 0
    %120 = vmatpush1.bf16.msra.mxu0 0
    %121 = vmatprep.subr.bf16.mxu0 0
    %122 = vmatpush1.bf16.msra.mxu0 0
    %123 = vmatprep.subr.bf16.mxu0 0
    %124 = vmatpush1.bf16.msra.mxu0 0
    %125 = vmatprep.subr.bf16.mxu0 0
    %126 = vmatpush1.bf16.msra.mxu0 0
    %127 = vmatprep.subr.bf16.mxu0 0
    %128 = vmatpush1.bf16.msra.mxu0 0
    %129 = vmatprep.subr.bf16.mxu0 0
    %130 = vmatpush1.bf16.msra.mxu0 0
    %131 = vmatprep.subr.bf16.mxu0 0
    %132 = vmatpush1.bf16.msra.mxu0 0
    %133 = vmatprep.subr.bf16.mxu0 %v111
    %134 = vmatpush1.bf16.msra.mxu0 %v108
    %135 = vmatprep.subr.bf16.mxu0 0
    %136 = vmatpush2.bf16.msra.mxu0 0
    %137 = vmatprep.subr.bf16.mxu0 0
    %138 = vmatpush2.bf16.msra.mxu0 0
    %139 = vmatprep.subr.bf16.mxu0 0
    %140 = vmatpush2.bf16.msra.mxu0 0
    %141 = vmatprep.subr.bf16.mxu0 0
    %142 = vmatpush2.bf16.msra.mxu0 0
    %143 = vmatprep.subr.bf16.mxu0 0
    %144 = vmatpush2.bf16.msra.mxu0 0
    %145 = vmatprep.subr.bf16.mxu0 0
    %146 = vmatpush2.bf16.msra.mxu0 0
    %147 = vmatprep.subr.bf16.mxu0 0
    %148 = vmatpush2.bf16.msra.mxu0 0
    %149 = vmatprep.subr.bf16.mxu0 0
    %150 = vmatpush2.bf16.msra.mxu0 0
    %151 = vmatprep.mubr.bf16.mxu0 0
    %152 = vmatmul.mubr.bf16.gmra.mxu0 %v104
    %v153 = vpop.f32.mrf.mxu0
    %v154 = vadd.f32 %v75, %v153
    %v155 = vpop.f32.mrf.mxu0
    %v156 = vadd.f32 %v79, %v155
    %v157 = vpop.f32.mrf.mxu0
    %v158 = vpop.f32.mrf.mxu0
    %159 = vdwg.mxu0
    %160 = vmatprep.subr.bf16.mxu0 0
    %161 = vmatpush1.bf16.msra.mxu0 0
    %162 = vmatprep.subr.bf16.mxu0 0
    %163 = vmatpush1.bf16.msra.mxu0 0
    %164 = vmatprep.subr.bf16.mxu0 0
    %165 = vmatpush1.bf16.msra.mxu0 0
    %166 = vmatprep.subr.bf16.mxu0 0
    %167 = vmatpush1.bf16.msra.mxu0 0
    %168 = vmatprep.subr.bf16.mxu0 0
    %169 = vmatpush1.bf16.msra.mxu0 0
    %170 = vmatprep.subr.bf16.mxu0 0
    %171 = vmatpush1.bf16.msra.mxu0 0
    %172 = vmatprep.subr.bf16.mxu0 0
    %173 = vmatpush1.bf16.msra.mxu0 0
    %174 = vmatprep.subr.bf16.mxu0 %v117
    %175 = vmatpush1.bf16.msra.mxu0 %v114
    %176 = vmatprep.subr.bf16.mxu0 0
    %177 = vmatpush2.bf16.msra.mxu0 0
    %178 = vmatprep.subr.bf16.mxu0 0
    %179 = vmatpush2.bf16.msra.mxu0 0
    %180 = vmatprep.subr.bf16.mxu0 0
    %181 = vmatpush2.bf16.msra.mxu0 0
    %182 = vmatprep.subr.bf16.mxu0 0
    %183 = vmatpush2.bf16.msra.mxu0 0
    %184 = vmatprep.subr.bf16.mxu0 0
    %185 = vmatpush2.bf16.msra.mxu0 0
    %186 = vmatprep.subr.bf16.mxu0 0
    %187 = vmatpush2.bf16.msra.mxu0 0
    %188 = vmatprep.subr.bf16.mxu0 0
    %189 = vmatpush2.bf16.msra.mxu0 0
    %190 = vmatprep.subr.bf16.mxu0 0
    %191 = vmatpush2.bf16.msra.mxu0 0
    %192 = vmatprep.mubr.bf16.mxu0 0
    %193 = vmatmul.mubr.bf16.gmra.mxu0 %v104
    %v194 = vpop.f32.mrf.mxu0
    %v195 = vadd.f32 %v83, %v194
    %v196 = vpop.f32.mrf.mxu0
    %v197 = vadd.f32 %v87, %v196
    %v198 = vpop.f32.mrf.mxu0
    %v199 = vpop.f32.mrf.mxu0
    %200 = vdwg.mxu0
    %v201 = vmax.f32 %v154, 0.0
    %v202 = vmax.f32 %v156, 0.0
    %v203 = vmax.f32 %v195, 0.0
    %v204 = vmax.f32 %v197, 0.0
    %v205 = vpack.c.bf16 %v201, %v201
    %v206 = vpack.c.bf16 %v202, %v202
    %v207 = vpack.c.bf16 %v203, %v203
    %v208 = vpack.c.bf16 %v204, %v204
    %v209 = vld [vmem:[#allocation4] sm:$0xff]
    %v210 = vld [vmem:[#allocation4 + $0x8] sm:$0xff]
    %v211 = vld [vmem:[#allocation4 + $0x10] sm:$0xff]
    %v212 = vld [vmem:[#allocation4 + $0x18] sm:$0xff]
    %v213 = vld [vmem:[#allocation4 + $0x20] sm:$0xff]
    %v214 = vld [vmem:[#allocation4 + $0x28] sm:$0xff]
    %v215 = vld [vmem:[#allocation4 + $0x30] sm:$0xff]
    %v216 = vld [vmem:[#allocation4 + $0x38] sm:$0xff]
    %v217 = vld [vmem:[#allocation4 + $0x40] sm:$0xff]
    %v218 = vld [vmem:[#allocation4 + $0x48] sm:$0xff]
    %v219 = vld [vmem:[#allocation4 + $0x50] sm:$0xff]
    %v220 = vld [vmem:[#allocation4 + $0x58] sm:$0xff]
    %v221 = vld [vmem:[#allocation4 + $0x60] sm:$0xff]
    %v222 = vld [vmem:[#allocation4 + $0x68] sm:$0xff]
    %v223 = vld [vmem:[#allocation4 + $0x70] sm:$0xff]
    %v224 = vld [vmem:[#allocation4 + $0x78] sm:$0xff]
    %v225 = vld [vmem:[#allocation4 + $0x80] sm:$0xff]
    %v226 = vld [vmem:[#allocation4 + $0x88] sm:$0xff]
    %v227 = vld [vmem:[#allocation4 + $0x90] sm:$0xff]
    %v228 = vld [vmem:[#allocation4 + $0x98] sm:$0xff]
    %v229 = vld [vmem:[#allocation4 + $0xa0] sm:$0xff]
    %v230 = vld [vmem:[#allocation4 + $0xa8] sm:$0xff]
    %v231 = vld [vmem:[#allocation4 + $0xb0] sm:$0xff]
    %v232 = vld [vmem:[#allocation4 + $0xb8] sm:$0xff]
    %v233 = vld [vmem:[#allocation4 + $0xc0] sm:$0xff]
    %v234 = vld [vmem:[#allocation4 + $0xc8] sm:$0xff]
    %v235 = vld [vmem:[#allocation4 + $0xd0] sm:$0xff]
    %v236 = vld [vmem:[#allocation4 + $0xd8] sm:$0xff]
    %v237 = vld [vmem:[#allocation4 + $0xe0] sm:$0xff]
    %v238 = vld [vmem:[#allocation4 + $0xe8] sm:$0xff]
    %v239 = vld [vmem:[#allocation4 + $0xf0] sm:$0xff]
    %v240 = vld [vmem:[#allocation4 + $0xf8] sm:$0xff]
    %v241 = vld [vmem:[#allocation4 + $0x100] sm:$0xff]
    %v242 = vld [vmem:[#allocation4 + $0x108] sm:$0xff]
    %v243 = vld [vmem:[#allocation4 + $0x110] sm:$0xff]
    %v244 = vld [vmem:[#allocation4 + $0x118] sm:$0xff]
    %v245 = vld [vmem:[#allocation4 + $0x120] sm:$0xff]
    %v246 = vld [vmem:[#allocation4 + $0x128] sm:$0xff]
    %v247 = vld [vmem:[#allocation4 + $0x130] sm:$0xff]
    %v248 = vld [vmem:[#allocation4 + $0x138] sm:$0xff]
    %v249 = vld [vmem:[#allocation4 + $0x140] sm:$0xff]
    %v250 = vld [vmem:[#allocation4 + $0x148] sm:$0xff]
    %v251 = vld [vmem:[#allocation4 + $0x150] sm:$0xff]
    %v252 = vld [vmem:[#allocation4 + $0x158] sm:$0xff]
    %v253 = vld [vmem:[#allocation4 + $0x160] sm:$0xff]
    %v254 = vld [vmem:[#allocation4 + $0x168] sm:$0xff]
    %v255 = vld [vmem:[#allocation4 + $0x170] sm:$0xff]
    %v256 = vld [vmem:[#allocation4 + $0x178] sm:$0xff]
    %v257 = vld [vmem:[#allocation4 + $0x180] sm:$0xff]
    %v258 = vld [vmem:[#allocation4 + $0x188] sm:$0xff]
    %v259 = vld [vmem:[#allocation4 + $0x190] sm:$0xff]
    %v260 = vld [vmem:[#allocation4 + $0x198] sm:$0xff]
    %v261 = vld [vmem:[#allocation4 + $0x1a0] sm:$0xff]
    %v262 = vld [vmem:[#allocation4 + $0x1a8] sm:$0xff]
    %v263 = vld [vmem:[#allocation4 + $0x1b0] sm:$0xff]
    %v264 = vld [vmem:[#allocation4 + $0x1b8] sm:$0xff]
    %v265 = vld [vmem:[#allocation4 + $0x1c0] sm:$0xff]
    %v266 = vld [vmem:[#allocation4 + $0x1c8] sm:$0xff]
    %v267 = vld [vmem:[#allocation4 + $0x1d0] sm:$0xff]
    %v268 = vld [vmem:[#allocation4 + $0x1d8] sm:$0xff]
    %v269 = vld [vmem:[#allocation4 + $0x1e0] sm:$0xff]
    %v270 = vld [vmem:[#allocation4 + $0x1e8] sm:$0xff]
    %v271 = vld [vmem:[#allocation4 + $0x1f0] sm:$0xff]
    %v272 = vld [vmem:[#allocation4 + $0x1f8] sm:$0xff]
    %v273 = vld [vmem:[%s4] sm:$0x3]
    %v275 = vlaneseq
    %v276 = vshrl.u32 %v275, 7
    %v277 = vsub.s32 0, %v276
    %v278 = vrot.slane %v273, %v277
    %v279 = vlaneseq
    %v280 = vshrl.u32 %v279, 7
    %v281 = vsub.s32 1, %v280
    %v282 = vrot.slane %v273, %v281
    %v349 = vunpack.c.l.b16 %v209
    %v350 = vunpack.c.h.b16 %v209
    %v351 = vunpack.c.l.b16 %v210
    %v352 = vunpack.c.h.b16 %v210
    %v353 = vunpack.c.l.b16 %v211
    %v354 = vunpack.c.h.b16 %v211
    %v355 = vunpack.c.l.b16 %v212
    %v356 = vunpack.c.h.b16 %v212
    %v357 = vunpack.c.l.b16 %v213
    %v358 = vunpack.c.h.b16 %v213
    %v359 = vunpack.c.l.b16 %v214
    %v360 = vunpack.c.h.b16 %v214
    %v361 = vunpack.c.l.b16 %v215
    %v362 = vunpack.c.h.b16 %v215
    %v363 = vunpack.c.l.b16 %v216
    %v364 = vunpack.c.h.b16 %v216
    %v365 = vunpack.c.l.b16 %v217
    %v366 = vunpack.c.h.b16 %v217
    %v367 = vunpack.c.l.b16 %v218
    %v368 = vunpack.c.h.b16 %v218
    %v369 = vunpack.c.l.b16 %v219
    %v370 = vunpack.c.h.b16 %v219
    %v371 = vunpack.c.l.b16 %v220
    %v372 = vunpack.c.h.b16 %v220
    %v373 = vunpack.c.l.b16 %v221
    %v374 = vunpack.c.h.b16 %v221
    %v375 = vunpack.c.l.b16 %v222
    %v376 = vunpack.c.h.b16 %v222
    %v377 = vunpack.c.l.b16 %v223
    %v378 = vunpack.c.h.b16 %v223
    %v379 = vunpack.c.l.b16 %v224
    %v380 = vunpack.c.h.b16 %v224
    %v381 = vunpack.c.l.b16 %v225
    %v382 = vunpack.c.h.b16 %v225
    %v383 = vunpack.c.l.b16 %v226
    %v384 = vunpack.c.h.b16 %v226
    %v385 = vunpack.c.l.b16 %v227
    %v386 = vunpack.c.h.b16 %v227
    %v387 = vunpack.c.l.b16 %v228
    %v388 = vunpack.c.h.b16 %v228
    %v389 = vunpack.c.l.b16 %v229
    %v390 = vunpack.c.h.b16 %v229
    %v391 = vunpack.c.l.b16 %v230
    %v392 = vunpack.c.h.b16 %v230
    %v393 = vunpack.c.l.b16 %v231
    %v394 = vunpack.c.h.b16 %v231
    %v395 = vunpack.c.l.b16 %v232
    %v396 = vunpack.c.h.b16 %v232
    %v397 = vunpack.c.l.b16 %v233
    %v398 = vunpack.c.h.b16 %v233
    %v399 = vunpack.c.l.b16 %v234
    %v400 = vunpack.c.h.b16 %v234
    %v401 = vunpack.c.l.b16 %v235
    %v402 = vunpack.c.h.b16 %v235
    %v403 = vunpack.c.l.b16 %v236
    %v404 = vunpack.c.h.b16 %v236
    %v405 = vunpack.c.l.b16 %v237
    %v406 = vunpack.c.h.b16 %v237
    %v407 = vunpack.c.l.b16 %v238
    %v408 = vunpack.c.h.b16 %v238
    %v409 = vunpack.c.l.b16 %v239
    %v410 = vunpack.c.h.b16 %v239
    %v411 = vunpack.c.l.b16 %v240
    %v412 = vunpack.c.h.b16 %v240
    %v413 = vunpack.c.l.b16 %v241
    %v414 = vunpack.c.h.b16 %v241
    %v415 = vunpack.c.l.b16 %v242
    %v416 = vunpack.c.h.b16 %v242
    %v417 = vunpack.c.l.b16 %v243
    %v418 = vunpack.c.h.b16 %v243
    %v419 = vunpack.c.l.b16 %v244
    %v420 = vunpack.c.h.b16 %v244
    %v421 = vunpack.c.l.b16 %v245
    %v422 = vunpack.c.h.b16 %v245
    %v423 = vunpack.c.l.b16 %v246
    %v424 = vunpack.c.h.b16 %v246
    %v425 = vunpack.c.l.b16 %v247
    %v426 = vunpack.c.h.b16 %v247
    %v427 = vunpack.c.l.b16 %v248
    %v428 = vunpack.c.h.b16 %v248
    %v429 = vunpack.c.l.b16 %v249
    %v430 = vunpack.c.h.b16 %v249
    %v431 = vunpack.c.l.b16 %v250
    %v432 = vunpack.c.h.b16 %v250
    %v433 = vunpack.c.l.b16 %v251
    %v434 = vunpack.c.h.b16 %v251
    %v435 = vunpack.c.l.b16 %v252
    %v436 = vunpack.c.h.b16 %v252
    %v437 = vunpack.c.l.b16 %v253
    %v438 = vunpack.c.h.b16 %v253
    %v439 = vunpack.c.l.b16 %v254
    %v440 = vunpack.c.h.b16 %v254
    %v441 = vunpack.c.l.b16 %v255
    %v442 = vunpack.c.h.b16 %v255
    %v443 = vunpack.c.l.b16 %v256
    %v444 = vunpack.c.h.b16 %v256
    %v445 = vunpack.c.l.b16 %v257
    %v446 = vunpack.c.h.b16 %v257
    %v447 = vunpack.c.l.b16 %v258
    %v448 = vunpack.c.h.b16 %v258
    %v449 = vunpack.c.l.b16 %v259
    %v450 = vunpack.c.h.b16 %v259
    %v451 = vunpack.c.l.b16 %v260
    %v452 = vunpack.c.h.b16 %v260
    %v453 = vunpack.c.l.b16 %v261
    %v454 = vunpack.c.h.b16 %v261
    %v455 = vunpack.c.l.b16 %v262
    %v456 = vunpack.c.h.b16 %v262
    %v457 = vunpack.c.l.b16 %v263
    %v458 = vunpack.c.h.b16 %v263
    %v459 = vunpack.c.l.b16 %v264
    %v460 = vunpack.c.h.b16 %v264
    %v461 = vunpack.c.l.b16 %v265
    %v462 = vunpack.c.h.b16 %v265
    %v463 = vunpack.c.l.b16 %v266
    %v464 = vunpack.c.h.b16 %v266
    %v465 = vunpack.c.l.b16 %v267
    %v466 = vunpack.c.h.b16 %v267
    %v467 = vunpack.c.l.b16 %v268
    %v468 = vunpack.c.h.b16 %v268
    %v469 = vunpack.c.l.b16 %v269
    %v470 = vunpack.c.h.b16 %v269
    %v471 = vunpack.c.l.b16 %v270
    %v472 = vunpack.c.h.b16 %v270
    %v473 = vunpack.c.l.b16 %v271
    %v474 = vunpack.c.h.b16 %v271
    %v475 = vunpack.c.l.b16 %v272
    %v476 = vunpack.c.h.b16 %v272
    %v477 = vpack.c.b16 %v351, %v349
    %v478 = vpack.c.b16 %v352, %v350
    %v479 = vpack.c.b16 %v355, %v353
    %v480 = vpack.c.b16 %v356, %v354
    %v481 = vpack.c.b16 %v359, %v357
    %v482 = vpack.c.b16 %v360, %v358
    %v483 = vpack.c.b16 %v363, %v361
    %v484 = vpack.c.b16 %v364, %v362
    %v485 = vpack.c.b16 %v367, %v365
    %v486 = vpack.c.b16 %v368, %v366
    %v487 = vpack.c.b16 %v371, %v369
    %v488 = vpack.c.b16 %v372, %v370
    %v489 = vpack.c.b16 %v375, %v373
    %v490 = vpack.c.b16 %v376, %v374
    %v491 = vpack.c.b16 %v379, %v377
    %v492 = vpack.c.b16 %v380, %v378
    %v493 = vpack.c.b16 %v383, %v381
    %v494 = vpack.c.b16 %v384, %v382
    %v495 = vpack.c.b16 %v387, %v385
    %v496 = vpack.c.b16 %v388, %v386
    %v497 = vpack.c.b16 %v391, %v389
    %v498 = vpack.c.b16 %v392, %v390
    %v499 = vpack.c.b16 %v395, %v393
    %v500 = vpack.c.b16 %v396, %v394
    %v501 = vpack.c.b16 %v399, %v397
    %v502 = vpack.c.b16 %v400, %v398
    %v503 = vpack.c.b16 %v403, %v401
    %v504 = vpack.c.b16 %v404, %v402
    %v505 = vpack.c.b16 %v407, %v405
    %v506 = vpack.c.b16 %v408, %v406
    %v507 = vpack.c.b16 %v411, %v409
    %v508 = vpack.c.b16 %v412, %v410
    %v509 = vpack.c.b16 %v415, %v413
    %v510 = vpack.c.b16 %v416, %v414
    %v511 = vpack.c.b16 %v419, %v417
    %v512 = vpack.c.b16 %v420, %v418
    %v513 = vpack.c.b16 %v423, %v421
    %v514 = vpack.c.b16 %v424, %v422
    %v515 = vpack.c.b16 %v427, %v425
    %v516 = vpack.c.b16 %v428, %v426
    %v517 = vpack.c.b16 %v431, %v429
    %v518 = vpack.c.b16 %v432, %v430
    %v519 = vpack.c.b16 %v435, %v433
    %v520 = vpack.c.b16 %v436, %v434
    %v521 = vpack.c.b16 %v439, %v437
    %v522 = vpack.c.b16 %v440, %v438
    %v523 = vpack.c.b16 %v443, %v441
    %v524 = vpack.c.b16 %v444, %v442
    %v525 = vpack.c.b16 %v447, %v445
    %v526 = vpack.c.b16 %v448, %v446
    %v527 = vpack.c.b16 %v451, %v449
    %v528 = vpack.c.b16 %v452, %v450
    %v529 = vpack.c.b16 %v455, %v453
    %v530 = vpack.c.b16 %v456, %v454
    %v531 = vpack.c.b16 %v459, %v457
    %v532 = vpack.c.b16 %v460, %v458
    %v533 = vpack.c.b16 %v463, %v461
    %v534 = vpack.c.b16 %v464, %v462
    %v535 = vpack.c.b16 %v467, %v465
    %v536 = vpack.c.b16 %v468, %v466
    %v537 = vpack.c.b16 %v471, %v469
    %v538 = vpack.c.b16 %v472, %v470
    %v539 = vpack.c.b16 %v475, %v473
    %v540 = vpack.c.b16 %v476, %v474
    %605 = vmatprep.subr.bf16.mxu0 %v492
    %606 = vmatpush1.bf16.msra.mxu0 %v491
    %607 = vmatprep.subr.bf16.mxu0 %v490
    %608 = vmatpush1.bf16.msra.mxu0 %v489
    %609 = vmatprep.subr.bf16.mxu0 %v488
    %610 = vmatpush1.bf16.msra.mxu0 %v487
    %611 = vmatprep.subr.bf16.mxu0 %v486
    %612 = vmatpush1.bf16.msra.mxu0 %v485
    %613 = vmatprep.subr.bf16.mxu0 %v484
    %614 = vmatpush1.bf16.msra.mxu0 %v483
    %615 = vmatprep.subr.bf16.mxu0 %v482
    %616 = vmatpush1.bf16.msra.mxu0 %v481
    %617 = vmatprep.subr.bf16.mxu0 %v480
    %618 = vmatpush1.bf16.msra.mxu0 %v479
    %619 = vmatprep.subr.bf16.mxu0 %v478
    %620 = vmatpush1.bf16.msra.mxu0 %v477
    %621 = vmatprep.subr.bf16.mxu0 %v508
    %622 = vmatpush2.bf16.msra.mxu0 %v507
    %623 = vmatprep.subr.bf16.mxu0 %v506
    %624 = vmatpush2.bf16.msra.mxu0 %v505
    %625 = vmatprep.subr.bf16.mxu0 %v504
    %626 = vmatpush2.bf16.msra.mxu0 %v503
    %627 = vmatprep.subr.bf16.mxu0 %v502
    %628 = vmatpush2.bf16.msra.mxu0 %v501
    %629 = vmatprep.subr.bf16.mxu0 %v500
    %630 = vmatpush2.bf16.msra.mxu0 %v499
    %631 = vmatprep.subr.bf16.mxu0 %v498
    %632 = vmatpush2.bf16.msra.mxu0 %v497
    %633 = vmatprep.subr.bf16.mxu0 %v496
    %634 = vmatpush2.bf16.msra.mxu0 %v495
    %635 = vmatprep.subr.bf16.mxu0 %v494
    %636 = vmatpush2.bf16.msra.mxu0 %v493
    %637 = vmatprep.mubr.bf16.mxu0 %v206
    %638 = vmatmul.mubr.bf16.gmra.mxu0 %v205
    %v639 = vpop.f32.mrf.mxu0
    %v640 = vadd.f32 %v278, %v639
    %v641 = vpop.f32.mrf.mxu0
    %v642 = vadd.f32 %v282, %v641
    %v643 = vpop.f32.mrf.mxu0
    %v644 = vpop.f32.mrf.mxu0
    %645 = vdwg.mxu0
    %646 = vmatprep.subr.bf16.mxu0 %v524
    %647 = vmatpush1.bf16.msra.mxu0 %v523
    %648 = vmatprep.subr.bf16.mxu0 %v522
    %649 = vmatpush1.bf16.msra.mxu0 %v521
    %650 = vmatprep.subr.bf16.mxu0 %v520
    %651 = vmatpush1.bf16.msra.mxu0 %v519
    %652 = vmatprep.subr.bf16.mxu0 %v518
    %653 = vmatpush1.bf16.msra.mxu0 %v517
    %654 = vmatprep.subr.bf16.mxu0 %v516
    %655 = vmatpush1.bf16.msra.mxu0 %v515
    %656 = vmatprep.subr.bf16.mxu0 %v514
    %657 = vmatpush1.bf16.msra.mxu0 %v513
    %658 = vmatprep.subr.bf16.mxu0 %v512
    %659 = vmatpush1.bf16.msra.mxu0 %v511
    %660 = vmatprep.subr.bf16.mxu0 %v510
    %661 = vmatpush1.bf16.msra.mxu0 %v509
    %662 = vmatprep.subr.bf16.mxu0 %v540
    %663 = vmatpush2.bf16.msra.mxu0 %v539
    %664 = vmatprep.subr.bf16.mxu0 %v538
    %665 = vmatpush2.bf16.msra.mxu0 %v537
    %666 = vmatprep.subr.bf16.mxu0 %v536
    %667 = vmatpush2.bf16.msra.mxu0 %v535
    %668 = vmatprep.subr.bf16.mxu0 %v534
    %669 = vmatpush2.bf16.msra.mxu0 %v533
    %670 = vmatprep.subr.bf16.mxu0 %v532
    %671 = vmatpush2.bf16.msra.mxu0 %v531
    %672 = vmatprep.subr.bf16.mxu0 %v530
    %673 = vmatpush2.bf16.msra.mxu0 %v529
    %674 = vmatprep.subr.bf16.mxu0 %v528
    %675 = vmatpush2.bf16.msra.mxu0 %v527
    %676 = vmatprep.subr.bf16.mxu0 %v526
    %677 = vmatpush2.bf16.msra.mxu0 %v525
    %678 = vmatprep.mubr.bf16.mxu0 %v208
    %679 = vmatmul.mubr.bf16.gmra.mxu0 %v207
    %v680 = vpop.f32.mrf.mxu0
    %v681 = vadd.f32 %v640, %v680
    %v682 = vpop.f32.mrf.mxu0
    %v683 = vadd.f32 %v642, %v682
    %v684 = vpop.f32.mrf.mxu0
    %v685 = vpop.f32.mrf.mxu0
    %686 = vdwg.mxu0
    %v687 = vmax.f32 %v681, 0.0
    %v688 = vmax.f32 %v683, 0.0
    %v689 = vpack.c.bf16 %v687, %v687
    %v690 = vpack.c.bf16 %v688, %v688
    %v691 = vld [vmem:[#allocation6] sm:$0xff]
    %v692 = vld [vmem:[#allocation6 + $0x8] sm:$0xff]
    %v693 = vld [vmem:[#allocation6 + $0x10] sm:$0xff]
    %v694 = vld [vmem:[#allocation6 + $0x18] sm:$0xff]
    %v695 = vld [vmem:[#allocation6 + $0x20] sm:$0xff]
    %v696 = vld [vmem:[#allocation6 + $0x28] sm:$0xff]
    %v697 = vld [vmem:[#allocation6 + $0x30] sm:$0xff]
    %v698 = vld [vmem:[#allocation6 + $0x38] sm:$0xff]
    %v699 = vld [vmem:[#allocation6 + $0x40] sm:$0xff]
    %v700 = vld [vmem:[#allocation6 + $0x48] sm:$0xff]
    %v701 = vld [vmem:[#allocation6 + $0x50] sm:$0xff]
    %v702 = vld [vmem:[#allocation6 + $0x58] sm:$0xff]
    %v703 = vld [vmem:[#allocation6 + $0x60] sm:$0xff]
    %v704 = vld [vmem:[#allocation6 + $0x68] sm:$0xff]
    %v705 = vld [vmem:[#allocation6 + $0x70] sm:$0xff]
    %v706 = vld [vmem:[#allocation6 + $0x78] sm:$0xff]
    %v707 = vld [vmem:[#allocation6 + $0x80] sm:$0xff]
    %v708 = vld [vmem:[#allocation6 + $0x88] sm:$0xff]
    %v709 = vld [vmem:[#allocation6 + $0x90] sm:$0xff]
    %v710 = vld [vmem:[#allocation6 + $0x98] sm:$0xff]
    %v711 = vld [vmem:[#allocation6 + $0xa0] sm:$0xff]
    %v712 = vld [vmem:[#allocation6 + $0xa8] sm:$0xff]
    %v713 = vld [vmem:[#allocation6 + $0xb0] sm:$0xff]
    %v714 = vld [vmem:[#allocation6 + $0xb8] sm:$0xff]
    %v715 = vld [vmem:[#allocation6 + $0xc0] sm:$0xff]
    %v716 = vld [vmem:[#allocation6 + $0xc8] sm:$0xff]
    %v717 = vld [vmem:[#allocation6 + $0xd0] sm:$0xff]
    %v718 = vld [vmem:[#allocation6 + $0xd8] sm:$0xff]
    %v719 = vld [vmem:[#allocation6 + $0xe0] sm:$0xff]
    %v720 = vld [vmem:[#allocation6 + $0xe8] sm:$0xff]
    %v721 = vld [vmem:[#allocation6 + $0xf0] sm:$0xff]
    %v722 = vld [vmem:[#allocation6 + $0xf8] sm:$0xff]
    %v723 = vld [vmem:[%s6] sm:$0x3]
    %v725 = vlaneseq
    %v726 = vshrl.u32 %v725, 7
    %v727 = vsub.s32 0, %v726
    %v728 = vrot.slane %v723, %v727
    %v729 = vlaneseq
    %v730 = vshrl.u32 %v729, 7
    %v731 = vsub.s32 1, %v730
    %v732 = vrot.slane %v723, %v731
    %v767 = vunpack.c.l.b16 %v691
    %v768 = vunpack.c.h.b16 %v691
    %v769 = vunpack.c.l.b16 %v692
    %v770 = vunpack.c.h.b16 %v692
    %v771 = vunpack.c.l.b16 %v693
    %v772 = vunpack.c.h.b16 %v693
    %v773 = vunpack.c.l.b16 %v694
    %v774 = vunpack.c.h.b16 %v694
    %v775 = vunpack.c.l.b16 %v695
    %v776 = vunpack.c.h.b16 %v695
    %v777 = vunpack.c.l.b16 %v696
    %v778 = vunpack.c.h.b16 %v696
    %v779 = vunpack.c.l.b16 %v697
    %v780 = vunpack.c.h.b16 %v697
    %v781 = vunpack.c.l.b16 %v698
    %v782 = vunpack.c.h.b16 %v698
    %v783 = vunpack.c.l.b16 %v699
    %v784 = vunpack.c.h.b16 %v699
    %v785 = vunpack.c.l.b16 %v700
    %v786 = vunpack.c.h.b16 %v700
    %v787 = vunpack.c.l.b16 %v701
    %v788 = vunpack.c.h.b16 %v701
    %v789 = vunpack.c.l.b16 %v702
    %v790 = vunpack.c.h.b16 %v702
    %v791 = vunpack.c.l.b16 %v703
    %v792 = vunpack.c.h.b16 %v703
    %v793 = vunpack.c.l.b16 %v704
    %v794 = vunpack.c.h.b16 %v704
    %v795 = vunpack.c.l.b16 %v705
    %v796 = vunpack.c.h.b16 %v705
    %v797 = vunpack.c.l.b16 %v706
    %v798 = vunpack.c.h.b16 %v706
    %v799 = vunpack.c.l.b16 %v707
    %v800 = vunpack.c.h.b16 %v707
    %v801 = vunpack.c.l.b16 %v708
    %v802 = vunpack.c.h.b16 %v708
    %v803 = vunpack.c.l.b16 %v709
    %v804 = vunpack.c.h.b16 %v709
    %v805 = vunpack.c.l.b16 %v710
    %v806 = vunpack.c.h.b16 %v710
    %v807 = vunpack.c.l.b16 %v711
    %v808 = vunpack.c.h.b16 %v711
    %v809 = vunpack.c.l.b16 %v712
    %v810 = vunpack.c.h.b16 %v712
    %v811 = vunpack.c.l.b16 %v713
    %v812 = vunpack.c.h.b16 %v713
    %v813 = vunpack.c.l.b16 %v714
    %v814 = vunpack.c.h.b16 %v714
    %v815 = vunpack.c.l.b16 %v715
    %v816 = vunpack.c.h.b16 %v715
    %v817 = vunpack.c.l.b16 %v716
    %v818 = vunpack.c.h.b16 %v716
    %v819 = vunpack.c.l.b16 %v717
    %v820 = vunpack.c.h.b16 %v717
    %v821 = vunpack.c.l.b16 %v718
    %v822 = vunpack.c.h.b16 %v718
    %v823 = vunpack.c.l.b16 %v719
    %v824 = vunpack.c.h.b16 %v719
    %v825 = vunpack.c.l.b16 %v720
    %v826 = vunpack.c.h.b16 %v720
    %v827 = vunpack.c.l.b16 %v721
    %v828 = vunpack.c.h.b16 %v721
    %v829 = vunpack.c.l.b16 %v722
    %v830 = vunpack.c.h.b16 %v722
    %v831 = vpack.c.b16 %v769, %v767
    %v832 = vpack.c.b16 %v770, %v768
    %v833 = vpack.c.b16 %v773, %v771
    %v834 = vpack.c.b16 %v774, %v772
    %v835 = vpack.c.b16 %v777, %v775
    %v836 = vpack.c.b16 %v778, %v776
    %v837 = vpack.c.b16 %v781, %v779
    %v838 = vpack.c.b16 %v782, %v780
    %v839 = vpack.c.b16 %v785, %v783
    %v840 = vpack.c.b16 %v786, %v784
    %v841 = vpack.c.b16 %v789, %v787
    %v842 = vpack.c.b16 %v790, %v788
    %v843 = vpack.c.b16 %v793, %v791
    %v844 = vpack.c.b16 %v794, %v792
    %v845 = vpack.c.b16 %v797, %v795
    %v846 = vpack.c.b16 %v798, %v796
    %v847 = vpack.c.b16 %v801, %v799
    %v848 = vpack.c.b16 %v802, %v800
    %v849 = vpack.c.b16 %v805, %v803
    %v850 = vpack.c.b16 %v806, %v804
    %v851 = vpack.c.b16 %v809, %v807
    %v852 = vpack.c.b16 %v810, %v808
    %v853 = vpack.c.b16 %v813, %v811
    %v854 = vpack.c.b16 %v814, %v812
    %v855 = vpack.c.b16 %v817, %v815
    %v856 = vpack.c.b16 %v818, %v816
    %v857 = vpack.c.b16 %v821, %v819
    %v858 = vpack.c.b16 %v822, %v820
    %v859 = vpack.c.b16 %v825, %v823
    %v860 = vpack.c.b16 %v826, %v824
    %v861 = vpack.c.b16 %v829, %v827
    %v862 = vpack.c.b16 %v830, %v828
    %895 = vmatprep.subr.bf16.mxu0 %v846
    %896 = vmatpush1.bf16.msra.mxu0 %v845
    %897 = vmatprep.subr.bf16.mxu0 %v844
    %898 = vmatpush1.bf16.msra.mxu0 %v843
    %899 = vmatprep.subr.bf16.mxu0 %v842
    %900 = vmatpush1.bf16.msra.mxu0 %v841
    %901 = vmatprep.subr.bf16.mxu0 %v840
    %902 = vmatpush1.bf16.msra.mxu0 %v839
    %903 = vmatprep.subr.bf16.mxu0 %v838
    %904 = vmatpush1.bf16.msra.mxu0 %v837
    %905 = vmatprep.subr.bf16.mxu0 %v836
    %906 = vmatpush1.bf16.msra.mxu0 %v835
    %907 = vmatprep.subr.bf16.mxu0 %v834
    %908 = vmatpush1.bf16.msra.mxu0 %v833
    %909 = vmatprep.subr.bf16.mxu0 %v832
    %910 = vmatpush1.bf16.msra.mxu0 %v831
    %911 = vmatprep.subr.bf16.mxu0 %v862
    %912 = vmatpush2.bf16.msra.mxu0 %v861
    %913 = vmatprep.subr.bf16.mxu0 %v860
    %914 = vmatpush2.bf16.msra.mxu0 %v859
    %915 = vmatprep.subr.bf16.mxu0 %v858
    %916 = vmatpush2.bf16.msra.mxu0 %v857
    %917 = vmatprep.subr.bf16.mxu0 %v856
    %918 = vmatpush2.bf16.msra.mxu0 %v855
    %919 = vmatprep.subr.bf16.mxu0 %v854
    %920 = vmatpush2.bf16.msra.mxu0 %v853
    %921 = vmatprep.subr.bf16.mxu0 %v852
    %922 = vmatpush2.bf16.msra.mxu0 %v851
    %923 = vmatprep.subr.bf16.mxu0 %v850
    %924 = vmatpush2.bf16.msra.mxu0 %v849
    %925 = vmatprep.subr.bf16.mxu0 %v848
    %926 = vmatpush2.bf16.msra.mxu0 %v847
    %927 = vmatprep.mubr.bf16.mxu0 %v690
    %928 = vmatmul.mubr.bf16.gmra.mxu0 %v689
    %v929 = vpop.f32.mrf.mxu0
    %v930 = vadd.f32 %v728, %v929
    %v931 = vpop.f32.mrf.mxu0
    %v932 = vadd.f32 %v732, %v931
    %v933 = vpop.f32.mrf.mxu0
    %v934 = vpop.f32.mrf.mxu0
    %935 = vdwg.mxu0
    %936 = vst [vmem:[%s7] sm:$0xff] %v930
    %937 = vst [vmem:[%s7 + $0x8] sm:$0xff] %v932
    // Predicated region
    $region42: #{distributional_dqn_forward.1} parent=1 // pred_check
      _
    $region43: #{distributional_dqn_forward.1} parent=1 // pred_check_branch
      %939 = sbr.rel (0) target = $region45
    $region44: #{distributional_dqn_forward.1} parent=1 // pred_region
      _
    $region45: #{distributional_dqn_forward.1} parent=1 // pred_fallthru
      _
    // Predicated region
    $region46: #{distributional_dqn_forward.1} parent=1 // pred_check
      _
    $region47: #{distributional_dqn_forward.1} parent=1 // pred_check_branch
      %941 = sbr.rel (0) target = $region49
    $region48: #{distributional_dqn_forward.1} parent=1 // pred_region
      _
    $region49: #{distributional_dqn_forward.1} parent=1 // pred_fallthru
      _
    %942 = vsyncpa [#allocation3], 1
    %943 = vsyncpa [#allocation5], 1

</llo_original>
